<compile_context>
chip_gen: v7x
topology: tpu7x:2x2x1
jax: 0.10.0
libtpu: 0.0.40
codegen_flags: <defaults>
</compile_context>

<pallas_src>
import jax
import jax.numpy as jnp
import numpy as np
from jax.experimental import pallas as pl
from jax.experimental.pallas import tpu as pltpu


def _cdsff_kernel(x_ref, wskip_ref, wout_ref, skip_ref, out_ref):
    # x_ref:     (1, Cin, HW)        input pixels, HW on lanes
    # wskip_ref: (KK*Cmid, Cin)      stacked deconv weight
    # wout_ref:  (KK*NC, Cin)        stacked (1x1-conv @ deconv) weight
    # skip_ref:  (1, KK*Cmid, HW)
    # out_ref:   (1, KK*NC, HW)
    x = x_ref[0]                                   # (Cin, HW)
    skip_ref[0] = jnp.dot(wskip_ref[...], x,
                          preferred_element_type=jnp.float32).astype(skip_ref.dtype)
    out_ref[0] = jnp.dot(wout_ref[...], x,
                         preferred_element_type=jnp.float32).astype(out_ref.dtype)


def cdsff_forward(x_nchw, w_deconv, w_conv, *, kernel_size, stride, padding):
    """Returns (out, skip) in NCHW, matching the PyTorch module."""
    assert kernel_size == stride and padding == 0, (
        "kernel only handles the non-overlapping deconv decomposition")
    N, Cin, H, W = x_nchw.shape
    k = kernel_size
    OH, OW = H * k, W * k
    Cmid = w_deconv.shape[1]          # 2
    NC = w_conv.shape[0]              # num_classes
    KK = k * k
    HW = H * W

    # Zero-cost layout: NCHW -> (N, Cin, HW). No transpose needed.
    x = x_nchw.reshape(N, Cin, HW)
    # Pad the lane axis to a multiple of 128 so stores stay unmasked.
    HW_pad = ((HW + 127) // 128) * 128
    if HW_pad != HW:
        x = jnp.pad(x, ((0, 0), (0, 0), (0, HW_pad - HW)))

    # Stacked deconv weight: (Cin, Cmid, KH, KW) -> (KH, KW, Cmid, Cin) -> (KK*Cmid, Cin)
    wd_t = jnp.transpose(w_deconv, (2, 3, 1, 0))              # (k, k, Cmid, Cin)
    wskip = wd_t.reshape(KK * Cmid, Cin)
    # Fold the 1x1 conv into the deconv weight: wout[(kh,kw), o, ci] = sum_m wc[o,m]*wd[ci,m,kh,kw]
    wc2 = w_conv.reshape(NC, Cmid)                             # (NC, Cmid)
    wout = jnp.einsum('om,abmc->aboc', wc2, wd_t).reshape(KK * NC, Cin)

    skip_blocks, out_blocks = pl.pallas_call(
        _cdsff_kernel,
        out_shape=(
            jax.ShapeDtypeStruct((N, KK * Cmid, HW_pad), jnp.float32),
            jax.ShapeDtypeStruct((N, KK * NC, HW_pad), jnp.float32),
        ),
        grid=(N,),
        in_specs=[
            pl.BlockSpec((1, Cin, HW_pad), lambda n: (n, 0, 0)),
            pl.BlockSpec((KK * Cmid, Cin), lambda n: (0, 0)),
            pl.BlockSpec((KK * NC, Cin), lambda n: (0, 0)),
        ],
        out_specs=(
            pl.BlockSpec((1, KK * Cmid, HW_pad), lambda n: (n, 0, 0)),
            pl.BlockSpec((1, KK * NC, HW_pad), lambda n: (n, 0, 0)),
        ),
        compiler_params=pltpu.CompilerParams(
            dimension_semantics=("parallel",)),
    )(x, wskip, wout)

    def blocks_to_nchw(blocks, c):
        # blocks: (N, KK*c, HW_pad), rows ordered (kh, kw, c), cols (ih, iw)
        b = blocks[:, :, :HW].reshape(N, k, k, c, H, W)   # (n, kh, kw, c, ih, iw)
        b = jnp.transpose(b, (0, 3, 4, 1, 5, 2))          # (n, c, ih, kh, iw, kw)
        return b.reshape(N, c, OH, OW)

    skip = blocks_to_nchw(skip_blocks, Cmid)
    out = blocks_to_nchw(out_blocks, NC)
    return out, skip


def _reference_numpy(x, wd, wc, k, s, p):
    """Direct loop reference for ConvTranspose2d + 1x1 Conv2d (bias-free)."""
    N, Cin, H, W = x.shape
    Cmid = wd.shape[1]
    NC = wc.shape[0]
    OH = (H - 1) * s - 2 * p + k
    OW = (W - 1) * s - 2 * p + k
    skip = np.zeros((N, Cmid, OH, OW), np.float32)
    for n in range(N):
        for ci in range(Cin):
            for ih in range(H):
                for iw in range(W):
                    for kh in range(k):
                        for kw in range(k):
                            oh = ih * s + kh - p
                            ow = iw * s + kw - p
                            if 0 <= oh < OH and 0 <= ow < OW:
                                skip[n, :, oh, ow] += x[n, ci, ih, iw] * wd[ci, :, kh, kw]
    out = np.einsum('oc,nchw->nohw', wc.reshape(NC, Cmid), skip)
    return out.astype(np.float32), skip


if __name__ == "__main__":
    # Module hyperparameters
    in_channels = 4
    num_classes = 3
    kernel_size = 2
    stride = 2
    padding = 0

    N, H, W = 2, 16, 16

    key = jax.random.PRNGKey(0)
    kx, kwd, kwc = jax.random.split(key, 3)

    x = jax.random.normal(kx, (N, in_channels, H, W), dtype=jnp.float32)
    # ConvTranspose2d weight shape: (in_channels, out_channels=2, KH, KW)
    w_deconv = jax.random.normal(
        kwd, (in_channels, 2, kernel_size, kernel_size), dtype=jnp.float32) * 0.1
    # Conv2d(2, num_classes, 1) weight shape: (num_classes, 2, 1, 1)
    w_conv = jax.random.normal(kwc, (num_classes, 2, 1, 1), dtype=jnp.float32) * 0.1

    out, skip = cdsff_forward(
        x, w_deconv, w_conv,
        kernel_size=kernel_size, stride=stride, padding=padding)
    out = jax.block_until_ready(out)
    skip = jax.block_until_ready(skip)

    # Correctness check against a direct numpy loop reference.
    ref_out, ref_skip = _reference_numpy(
        np.asarray(x), np.asarray(w_deconv), np.asarray(w_conv),
        kernel_size, stride, padding)

    np.testing.assert_allclose(np.asarray(skip), ref_skip, rtol=1e-5, atol=1e-5)
    np.testing.assert_allclose(np.asarray(out), ref_out, rtol=1e-5, atol=1e-5)

    print("KERNEL_OK")
</pallas_src>

<mosaic_0001>
module attributes {stable_mosaic.version = 11 : i64} {
  func.func @_cdsff_kernel(%arg0: i32, %arg1: memref<1x4x256xf32, #tpu.memory_space<vmem>>, %arg2: memref<8x4xf32, #tpu.memory_space<vmem>>, %arg3: memref<12x4xf32, #tpu.memory_space<vmem>>, %arg4: memref<1x8x256xf32, #tpu.memory_space<vmem>>, %arg5: memref<1x12x256xf32, #tpu.memory_space<vmem>>) attributes {dimension_semantics = [#tpu.dimension_semantics<parallel>], iteration_bounds = array<i64: 2>, scalar_prefetch = 0 : i64, scratch_operands = 0 : i64, tpu.core_type = #tpu.core_type<tc>, window_params = [{transform_indices = @transform_0, window_bounds = array<i64: 1, 4, 256>}, {pipeline_mode = #tpu.pipeline_mode<synchronous>, transform_indices = @transform_1, window_bounds = array<i64: 8, 4>}, {pipeline_mode = #tpu.pipeline_mode<synchronous>, transform_indices = @transform_2, window_bounds = array<i64: 12, 4>}, {transform_indices = @transform_3, window_bounds = array<i64: 1, 8, 256>}, {transform_indices = @transform_4, window_bounds = array<i64: 1, 12, 256>}]} {
    %c0 = arith.constant 0 : index
    %c0_0 = arith.constant 0 : index
    %c0_1 = arith.constant 0 : index
    %0 = vector.load %arg1[%c0, %c0_0, %c0_1] : memref<1x4x256xf32, #tpu.memory_space<vmem>>, vector<1x4x256xf32>
    %1 = vector.shape_cast %0 : vector<1x4x256xf32> to vector<4x256xf32>
    %c0_2 = arith.constant 0 : index
    %c0_3 = arith.constant 0 : index
    %2 = vector.load %arg2[%c0_2, %c0_3] : memref<8x4xf32, #tpu.memory_space<vmem>>, vector<8x4xf32>
    %cst = arith.constant dense<0.000000e+00> : vector<8x256xf32>
    %3 = tpu.matmul %2, %1, %cst {dimension_numbers = #tpu.dot_dimension_numbers<[1], [0], [0], [1], [0, 0, 1, 1], [], []>} : vector<8x4xf32>, vector<4x256xf32>, vector<8x256xf32> -> vector<8x256xf32>
    %c0_4 = arith.constant 0 : index
    %c0_5 = arith.constant 0 : index
    %c0_6 = arith.constant 0 : index
    %4 = vector.load %arg4[%c0_4, %c0_5, %c0_6] : memref<1x8x256xf32, #tpu.memory_space<vmem>>, vector<1x8x256xf32>
    %5 = vector.shape_cast %4 : vector<1x8x256xf32> to vector<8x256xf32>
    %6 = vector.shape_cast %3 : vector<8x256xf32> to vector<1x8x256xf32>
    tpu.vector_store %arg4[%c0_4, %c0_5, %c0_6], %6 {strides = array<i32>} : memref<1x8x256xf32, #tpu.memory_space<vmem>>, vector<1x8x256xf32>,
    %c0_7 = arith.constant 0 : index
    %c0_8 = arith.constant 0 : index
    %7 = vector.load %arg3[%c0_7, %c0_8] : memref<12x4xf32, #tpu.memory_space<vmem>>, vector<12x4xf32>
    %cst_9 = arith.constant dense<0.000000e+00> : vector<12x256xf32>
    %8 = tpu.matmul %7, %1, %cst_9 {dimension_numbers = #tpu.dot_dimension_numbers<[1], [0], [0], [1], [0, 0, 1, 1], [], []>} : vector<12x4xf32>, vector<4x256xf32>, vector<12x256xf32> -> vector<12x256xf32>
    %c0_10 = arith.constant 0 : index
    %c0_11 = arith.constant 0 : index
    %c0_12 = arith.constant 0 : index
    %9 = vector.load %arg5[%c0_10, %c0_11, %c0_12] : memref<1x12x256xf32, #tpu.memory_space<vmem>>, vector<1x12x256xf32>
    %10 = vector.shape_cast %9 : vector<1x12x256xf32> to vector<12x256xf32>
    %11 = vector.shape_cast %8 : vector<12x256xf32> to vector<1x12x256xf32>
    tpu.vector_store %arg5[%c0_10, %c0_11, %c0_12], %11 {strides = array<i32>} : memref<1x12x256xf32, #tpu.memory_space<vmem>>, vector<1x12x256xf32>,
    return
  }
  func.func @transform_0(%arg0: i32) -> (i32, i32, i32) {
    %c0_i32 = arith.constant 0 : i32
    %c0_i32_0 = arith.constant 0 : i32
    %c0_i32_1 = arith.constant 0 : i32
    return %arg0, %c0_i32, %c0_i32_0 : i32, i32, i32
  }
  func.func @transform_1(%arg0: i32) -> (i32, i32) {
    %c0_i32 = arith.constant 0 : i32
    %c0_i32_0 = arith.constant 0 : i32
    %c0_i32_1 = arith.constant 0 : i32
    return %c0_i32, %c0_i32_0 : i32, i32
  }
  func.func @transform_2(%arg0: i32) -> (i32, i32) {
    %c0_i32 = arith.constant 0 : i32
    %c0_i32_0 = arith.constant 0 : i32
    %c0_i32_1 = arith.constant 0 : i32
    return %c0_i32, %c0_i32_0 : i32, i32
  }
  func.func @transform_3(%arg0: i32) -> (i32, i32, i32) {
    %c0_i32 = arith.constant 0 : i32
    %c0_i32_0 = arith.constant 0 : i32
    %c0_i32_1 = arith.constant 0 : i32
    return %arg0, %c0_i32, %c0_i32_0 : i32, i32, i32
  }
  func.func @transform_4(%arg0: i32) -> (i32, i32, i32) {
    %c0_i32 = arith.constant 0 : i32
    %c0_i32_0 = arith.constant 0 : i32
    %c0_i32_1 = arith.constant 0 : i32
    return %arg0, %c0_i32, %c0_i32_0 : i32, i32, i32
  }
}

</mosaic_0001>

<llo_original>
// kernel: tpu_custom_call.1
$region0: #{tpu_custom_call.1}
  #allocation0 [shape = 'u32[]', space=smem, size = 0x4, offset = 0x4, fixed_abs, tag = 'smem constant byte address 0x4 - core index']
  #allocation1 [shape = 'u32[144,128]{1,0:T(1,128)}', space=vmem, size = 0x12000, scoped, tag = 'internal scratch']
  %s0 = inlined_call_operand.vmem [shape: f32[2,4,256], index: 0, kind: input, shape index: {}]
  %s1 = inlined_call_operand.vmem [shape: f32[8,4], index: 1, kind: input, shape index: {}]
  %s2 = inlined_call_operand.vmem [shape: f32[12,4], index: 2, kind: input, shape index: {}]
  %s3 = inlined_call_operand.hbm [shape: f32[2,8,256], index: 3, kind: output, shape index: {0}]
  %s4 = inlined_call_operand.vmem [shape: f32[2,12,256], index: 4, kind: output, shape index: {1}]
  %5 = xla_tuple %s3, %s4
  %s6 = sld [smem:[#allocation0]]
  $region53: #{tpu_custom_call.1} parent=0
    _
  %s8 = ssub.s32 1, %s6
  %s9 = scalar_select 0, %s8, %s6
  $region1: #{tpu_custom_call.1} parent=0
    #allocation2 [shape = 'u8[16384]{0}', space=vmem, size = 0x4000, scoped, tag = 'output window, operand 0']
    #allocation3 [shape = 's32[2]{0}', space=sflag, size = 0x8, scoped, tag = 'scoped memory for tpu_custom_call.1']
    %10 = vsyncpa [#allocation3], 0
    %s11 = scalar_lea.sflag [#allocation3], 1
    %12 = vsyncpa %s11, 0
    loop: start=0, step=1, limit=4
    $region2: #{tpu_custom_call.1} parent=1 // loop_pre_header
      _
    $region3: #{tpu_custom_call.1} parent=1 // loop_header
      %s14 = sphi 0, %s18
      %p15 = scmp.ge.s32.totalorder %s14, 4
      %s24 = sphi 0, %s26
      %s27 = sphi 0, %s24
      %s28 = sphi 0, %s27
      %s44 = sphi 0, %s28
      %s48 = sphi 0, %s48
      %s50 = sphi 0, %s48
      %s51 = sphi 0, %s50
      %s65 = sphi 0, %s51
      %s69 = sphi 0, %s69
      %s71 = sphi 0, %s69
      %s72 = sphi 0, %s71
      %s86 = sphi 0, %s72
      %s92 = sphi 0, %s94
      %s95 = sphi 0, %s92
      %s96 = sphi 0, %s95
      %s112 = sphi 0, %s96
      %s118 = sphi 0, %s120
      %s121 = sphi 0, %s118
      %s122 = sphi 0, %s121
      %s138 = sphi 0, %s122
    $region4: #{tpu_custom_call.1} parent=1 // loop_header_branch
      %17 = sbr.rel (%p15) target = $region8
    $region5: #{tpu_custom_call.1} parent=1 // loop_body
      %s19 = ssub.s32 %s14, 1
      %s20 = ssub.s32 %s14, 2
      %s21 = sadd.s32 %s14, 1
      %s22 = ssub.s32 %s14, %s21
      %p23 = scmp.eq.s32.totalorder %s22, 0
      %s25 = sadd.s32 %s24, 1
      %s26 = scalar_select %p23, %s24, %s25
      %p29 = pneg %p23
      %p30 = scmp.eq.s32.totalorder %s14, 1
      %p31 = por %p29, %p30
      %p32 = scmp.ne.s32.totalorder %s24, %s27
      %p33 = scmp.eq.s32.totalorder %s14, 0
      %p34 = por %p32, %p33
      %p35 = scmp.ne.s32.totalorder %s24, %s27
      %p36 = scmp.eq.s32.totalorder %s19, 1
      %p37 = por %p35, %p36
      %p38 = scmp.ne.s32.totalorder %s27, %s28
      %p39 = scmp.eq.s32.totalorder %s19, 0
      %p40 = por %p38, %p39
      %p41 = scmp.ne.s32.totalorder %s27, %s28
      %p42 = scmp.eq.s32.totalorder %s20, 1
      %p43 = por %p41, %p42
      %p45 = scmp.ne.s32.totalorder %s28, %s44
      %p46 = scmp.eq.s32.totalorder %s20, 0
      %p47 = por %p45, %p46
      %s49 = sadd.s32 %s48, 1
      %p52 = scmp.eq.s32.totalorder %s14, 1
      %p53 = scmp.ne.s32.totalorder %s48, %s50
      %p54 = scmp.eq.s32.totalorder %s14, 0
      %p55 = por %p53, %p54
      %p56 = scmp.ne.s32.totalorder %s48, %s50
      %p57 = scmp.eq.s32.totalorder %s19, 1
      %p58 = por %p56, %p57
      %p59 = scmp.ne.s32.totalorder %s50, %s51
      %p60 = scmp.eq.s32.totalorder %s19, 0
      %p61 = por %p59, %p60
      %p62 = scmp.ne.s32.totalorder %s50, %s51
      %p63 = scmp.eq.s32.totalorder %s20, 1
      %p64 = por %p62, %p63
      %p66 = scmp.ne.s32.totalorder %s51, %s65
      %p67 = scmp.eq.s32.totalorder %s20, 0
      %p68 = por %p66, %p67
      %s70 = sadd.s32 %s69, 1
      %p73 = scmp.eq.s32.totalorder %s14, 1
      %p74 = scmp.ne.s32.totalorder %s69, %s71
      %p75 = scmp.eq.s32.totalorder %s14, 0
      %p76 = por %p74, %p75
      %p77 = scmp.ne.s32.totalorder %s69, %s71
      %p78 = scmp.eq.s32.totalorder %s19, 1
      %p79 = por %p77, %p78
      %p80 = scmp.ne.s32.totalorder %s71, %s72
      %p81 = scmp.eq.s32.totalorder %s19, 0
      %p82 = por %p80, %p81
      %p83 = scmp.ne.s32.totalorder %s71, %s72
      %p84 = scmp.eq.s32.totalorder %s20, 1
      %p85 = por %p83, %p84
      %p87 = scmp.ne.s32.totalorder %s72, %s86
      %p88 = scmp.eq.s32.totalorder %s20, 0
      %p89 = por %p87, %p88
      %s90 = ssub.s32 %s14, %s21
      %p91 = scmp.eq.s32.totalorder %s90, 0
      %s93 = sadd.s32 %s92, 1
      %s94 = scalar_select %p91, %s92, %s93
      %p97 = pneg %p91
      %p98 = scmp.eq.s32.totalorder %s14, 1
      %p99 = por %p97, %p98
      %p100 = scmp.ne.s32.totalorder %s92, %s95
      %p101 = scmp.eq.s32.totalorder %s14, 0
      %p102 = por %p100, %p101
      %p103 = scmp.ne.s32.totalorder %s92, %s95
      %p104 = scmp.eq.s32.totalorder %s19, 1
      %p105 = por %p103, %p104
      %p106 = scmp.ne.s32.totalorder %s95, %s96
      %p107 = scmp.eq.s32.totalorder %s19, 0
      %p108 = por %p106, %p107
      %p109 = scmp.ne.s32.totalorder %s95, %s96
      %p110 = scmp.eq.s32.totalorder %s20, 1
      %p111 = por %p109, %p110
      %p113 = scmp.ne.s32.totalorder %s96, %s112
      %p114 = scmp.eq.s32.totalorder %s20, 0
      %p115 = por %p113, %p114
      %s116 = ssub.s32 %s14, %s21
      %p117 = scmp.eq.s32.totalorder %s116, 0
      %s119 = sadd.s32 %s118, 1
      %s120 = scalar_select %p117, %s118, %s119
      %p123 = pneg %p117
      %p124 = scmp.eq.s32.totalorder %s14, 1
      %p125 = por %p123, %p124
      %p126 = scmp.ne.s32.totalorder %s118, %s121
      %p127 = scmp.eq.s32.totalorder %s14, 0
      %p128 = por %p126, %p127
      %p129 = scmp.ne.s32.totalorder %s118, %s121
      %p130 = scmp.eq.s32.totalorder %s19, 1
      %p131 = por %p129, %p130
      %p132 = scmp.ne.s32.totalorder %s121, %s122
      %p133 = scmp.eq.s32.totalorder %s19, 0
      %p134 = por %p132, %p133
      %p135 = scmp.ne.s32.totalorder %s121, %s122
      %p136 = scmp.eq.s32.totalorder %s20, 1
      %p137 = por %p135, %p136
      %p139 = scmp.ne.s32.totalorder %s122, %s138
      %p140 = scmp.eq.s32.totalorder %s20, 0
      %p141 = por %p139, %p140
      %p142 = scmp.le.s32.totalorder 1, %s14
      %p143 = scmp.lt.s32.totalorder %s14, 3
      %p144 = pnand %p142, %p143
      %p145 = pneg %p144
      // Predicated region
      $region9: #{tpu_custom_call.1} parent=5 // pred_check
        _
      $region10: #{tpu_custom_call.1} parent=5 // pred_check_branch
        %147 = sbr.rel (%p144) target = $region12
      $region11: #{tpu_custom_call.1} parent=5 // pred_region
        %s148 = ssub.s32 %s14, 1
        // Predicated region
        $region13: #{tpu_custom_call.1} parent=11 // pred_check
          %p149 = pneg %p61
        $region14: #{tpu_custom_call.1} parent=11 // pred_check_branch
          %151 = sbr.rel (%p149) target = $region16
        $region15: #{tpu_custom_call.1} parent=11 // pred_region
          _
        $region16: #{tpu_custom_call.1} parent=11 // pred_fallthru
          _
        // Predicated region
        $region17: #{tpu_custom_call.1} parent=11 // pred_check
          %p152 = pneg %p82
        $region18: #{tpu_custom_call.1} parent=11 // pred_check_branch
          %154 = sbr.rel (%p152) target = $region20
        $region19: #{tpu_custom_call.1} parent=11 // pred_region
          _
        $region20: #{tpu_custom_call.1} parent=11 // pred_fallthru
          _
      $region12: #{tpu_custom_call.1} parent=5 // pred_fallthru
        _
      %p155 = scmp.lt.s32.totalorder %s14, 2
      // Predicated region
      $region21: #{tpu_custom_call.1} parent=5 // pred_check
        %p156 = pneg %p155
      $region22: #{tpu_custom_call.1} parent=5 // pred_check_branch
        %158 = sbr.rel (%p156) target = $region24
      $region23: #{tpu_custom_call.1} parent=5 // pred_region
        // Predicated region
        $region25: #{tpu_custom_call.1} parent=23 // pred_check
          %p159 = pneg %p34
        $region26: #{tpu_custom_call.1} parent=23 // pred_check_branch
          %161 = sbr.rel (%p159) target = $region28
        $region27: #{tpu_custom_call.1} parent=23 // pred_region
          %p162 = scmp.lt.s32.totalorder %s14, 1
          %s163 = scalar_select %p162, %s14, 1
          %s164 = smul.addr %s163, 2
          %s165 = smul.addr %s164, 4
          %s166 = scalar_lea.vmem %s0, %s165
        $region28: #{tpu_custom_call.1} parent=23 // pred_fallthru
          _
      $region24: #{tpu_custom_call.1} parent=5 // pred_fallthru
        _
      %p167 = scmp.le.s32.totalorder 1, %s14
      %p168 = scmp.lt.s32.totalorder %s14, 3
      %p169 = pnand %p167, %p168
      %p170 = pneg %p169
      // Predicated region
      $region29: #{tpu_custom_call.1} parent=5 // pred_check
        _
      $region30: #{tpu_custom_call.1} parent=5 // pred_check_branch
        %172 = sbr.rel (%p169) target = $region32
      $region31: #{tpu_custom_call.1} parent=5 // pred_region
        %s173 = ssub.s32 %s14, 1
        %p174 = scmp.lt.s32.totalorder %s19, 1
        %s175 = scalar_select %p174, %s19, 1
        %s176 = smul.addr %s175, 2
        %s177 = smul.addr %s176, 4
        %s178 = scalar_lea.vmem %s0, %s177
        %p179 = pneg %p40
        %p180 = pneg %p37
        %p181 = pneg %p61
        %p182 = pneg %p58
        %p183 = pneg %p82
        %p184 = pneg %p79
        %p185 = pneg %p108
        %p186 = pneg %p105
        %s187 = sand.u32 %s95, 1
        %s188 = scalar_lea.sflag [#allocation3], %s187
        %s189 = sand.u32 %s95, 1
        %s190 = smul.addr %s189, 16
        %s191 = scalar_lea.vmem [#allocation2], %s190
        %p192 = pneg %p134
        %p193 = pneg %p131
        %p194 = scmp.lt.s32.totalorder %s19, 1
        %s195 = scalar_select %p194, %s19, 1
        %s196 = smul.addr %s195, 4
        %s197 = smul.addr %s196, 8
        %s198 = scalar_lea.vmem %s4, %s197
        %p199 = scmp.lt.s32.totalorder %s19, 1
        %s200 = scalar_select %p199, %s19, 1
        %s201 = smul.addr %s200, 2
        %s202 = smul.addr %s201, 4
        %s203 = scalar_lea.vmem %s0, %s202
        %p204 = scmp.lt.s32.totalorder %s19, 1
        %s205 = scalar_select %p204, %s19, 1
        %s206 = smul.addr %s205, 4
        %s207 = smul.addr %s206, 8
        %s208 = scalar_lea.vmem %s4, %s207
        %v209 = vld [vmem:[%s203] sm:$0xff]
        %v210 = vld [vmem:[%s1] sm:$0xff]
        %v212 = vcombine.high %v209, %v209
        %vm213 = vcmask 31744
        %v215 = vsel %vm213, %v210, 0
        %vm217 = vcmask 1043456
        %v218 = vsel %vm217, %v209, 0
        %v220 = vsel %vm217, %v212, 0
        %222 = vmatprep.subr.mxu0 %v220
        %223 = vmatpush1.msra.mxu0 %v218
        %224 = vmatprep.subr.mxu0 0.0
        %225 = vmatpush1.msra.mxu0 0.0
        %226 = vmatprep.subr.mxu0 0.0
        %227 = vmatpush1.msra.mxu0 0.0
        %228 = vmatprep.subr.mxu0 0.0
        %229 = vmatpush1.msra.mxu0 0.0
        %230 = vmatprep.subr.mxu0 0.0
        %231 = vmatpush1.msra.mxu0 0.0
        %232 = vmatprep.subr.mxu0 0.0
        %233 = vmatpush1.msra.mxu0 0.0
        %234 = vmatprep.subr.mxu0 0.0
        %235 = vmatpush1.msra.mxu0 0.0
        %236 = vmatprep.subr.mxu0 0.0
        %237 = vmatpush1.msra.mxu0 0.0
        %238 = vmatprep.subr.mxu0 0.0
        %239 = vmatpush1.msra.mxu0 0.0
        %240 = vmatprep.subr.mxu0 0.0
        %241 = vmatpush1.msra.mxu0 0.0
        %242 = vmatprep.subr.mxu0 0.0
        %243 = vmatpush1.msra.mxu0 0.0
        %244 = vmatprep.subr.mxu0 0.0
        %245 = vmatpush1.msra.mxu0 0.0
        %246 = vmatprep.subr.mxu0 0.0
        %247 = vmatpush1.msra.mxu0 0.0
        %248 = vmatprep.subr.mxu0 0.0
        %249 = vmatpush1.msra.mxu0 0.0
        %250 = vmatprep.subr.mxu0 0.0
        %251 = vmatpush1.msra.mxu0 0.0
        %252 = vmatprep.subr.mxu0 0.0
        %253 = vmatpush1.msra.mxu0 0.0
        %254 = vmatprep.subr.mxu0 0.0
        %255 = vmatpush1.msra.mxu0 0.0
        %256 = vmatprep.subr.mxu0 0.0
        %257 = vmatpush1.msra.mxu0 0.0
        %258 = vmatprep.subr.mxu0 0.0
        %259 = vmatpush1.msra.mxu0 0.0
        %260 = vmatprep.subr.mxu0 0.0
        %261 = vmatpush1.msra.mxu0 0.0
        %262 = vmatprep.subr.mxu0 0.0
        %263 = vmatpush1.msra.mxu0 0.0
        %264 = vmatprep.subr.mxu0 0.0
        %265 = vmatpush1.msra.mxu0 0.0
        %266 = vmatprep.subr.mxu0 0.0
        %267 = vmatpush1.msra.mxu0 0.0
        %268 = vmatprep.subr.mxu0 0.0
        %269 = vmatpush1.msra.mxu0 0.0
        %270 = vmatprep.subr.mxu0 0.0
        %271 = vmatpush1.msra.mxu0 0.0
        %272 = vmatprep.subr.mxu0 0.0
        %273 = vmatpush1.msra.mxu0 0.0
        %274 = vmatprep.subr.mxu0 0.0
        %275 = vmatpush1.msra.mxu0 0.0
        %276 = vmatprep.subr.mxu0 0.0
        %277 = vmatpush1.msra.mxu0 0.0
        %278 = vmatprep.subr.mxu0 0.0
        %279 = vmatpush1.msra.mxu0 0.0
        %280 = vmatprep.subr.mxu0 0.0
        %281 = vmatpush1.msra.mxu0 0.0
        %282 = vmatprep.subr.mxu0 0.0
        %283 = vmatpush1.msra.mxu0 0.0
        %284 = vmatprep.subr.mxu0 0.0
        %285 = vmatpush1.msra.mxu0 0.0
        %286 = vmatprep.mubr.f32.mxu0 0.0
        %287 = vmatmul.mubr.f32.gmra.mrb[0].mxu0 %v215
        %v288 = vpop.f32.mrb[0].mxu0
        %v289 = vadd.f32 0.0, %v288
        %v290 = vpop.f32.mrb[0].mxu0
        %v291 = vadd.f32 0.0, %v290
        %292 = vdwg.mxu0
        %293 = vst [vmem:[%s191] sm:$0xff] %v289
        %294 = vst [vmem:[%s191 + $0x8] sm:$0xff] %v291
        %v295 = vld [vmem:[%s2] sm:$0xff]
        %v296 = vld [vmem:[%s2 + $0x8] sm:$0xf]
        %v298 = vsel %vm213, %v295, 0
        %v301 = vsel %vm213, %v296, 0
        %303 = vmatprep.subr.mxu0 %v220
        %304 = vmatpush1.msra.mxu0 %v218
        %305 = vmatprep.subr.mxu0 0.0
        %306 = vmatpush1.msra.mxu0 0.0
        %307 = vmatprep.subr.mxu0 0.0
        %308 = vmatpush1.msra.mxu0 0.0
        %309 = vmatprep.subr.mxu0 0.0
        %310 = vmatpush1.msra.mxu0 0.0
        %311 = vmatprep.subr.mxu0 0.0
        %312 = vmatpush1.msra.mxu0 0.0
        %313 = vmatprep.subr.mxu0 0.0
        %314 = vmatpush1.msra.mxu0 0.0
        %315 = vmatprep.subr.mxu0 0.0
        %316 = vmatpush1.msra.mxu0 0.0
        %317 = vmatprep.subr.mxu0 0.0
        %318 = vmatpush1.msra.mxu0 0.0
        %319 = vmatprep.subr.mxu0 0.0
        %320 = vmatpush1.msra.mxu0 0.0
        %321 = vmatprep.subr.mxu0 0.0
        %322 = vmatpush1.msra.mxu0 0.0
        %323 = vmatprep.subr.mxu0 0.0
        %324 = vmatpush1.msra.mxu0 0.0
        %325 = vmatprep.subr.mxu0 0.0
        %326 = vmatpush1.msra.mxu0 0.0
        %327 = vmatprep.subr.mxu0 0.0
        %328 = vmatpush1.msra.mxu0 0.0
        %329 = vmatprep.subr.mxu0 0.0
        %330 = vmatpush1.msra.mxu0 0.0
        %331 = vmatprep.subr.mxu0 0.0
        %332 = vmatpush1.msra.mxu0 0.0
        %333 = vmatprep.subr.mxu0 0.0
        %334 = vmatpush1.msra.mxu0 0.0
        %335 = vmatprep.subr.mxu0 0.0
        %336 = vmatpush1.msra.mxu0 0.0
        %337 = vmatprep.subr.mxu0 0.0
        %338 = vmatpush1.msra.mxu0 0.0
        %339 = vmatprep.subr.mxu0 0.0
        %340 = vmatpush1.msra.mxu0 0.0
        %341 = vmatprep.subr.mxu0 0.0
        %342 = vmatpush1.msra.mxu0 0.0
        %343 = vmatprep.subr.mxu0 0.0
        %344 = vmatpush1.msra.mxu0 0.0
        %345 = vmatprep.subr.mxu0 0.0
        %346 = vmatpush1.msra.mxu0 0.0
        %347 = vmatprep.subr.mxu0 0.0
        %348 = vmatpush1.msra.mxu0 0.0
        %349 = vmatprep.subr.mxu0 0.0
        %350 = vmatpush1.msra.mxu0 0.0
        %351 = vmatprep.subr.mxu0 0.0
        %352 = vmatpush1.msra.mxu0 0.0
        %353 = vmatprep.subr.mxu0 0.0
        %354 = vmatpush1.msra.mxu0 0.0
        %355 = vmatprep.subr.mxu0 0.0
        %356 = vmatpush1.msra.mxu0 0.0
        %357 = vmatprep.subr.mxu0 0.0
        %358 = vmatpush1.msra.mxu0 0.0
        %359 = vmatprep.subr.mxu0 0.0
        %360 = vmatpush1.msra.mxu0 0.0
        %361 = vmatprep.subr.mxu0 0.0
        %362 = vmatpush1.msra.mxu0 0.0
        %363 = vmatprep.subr.mxu0 0.0
        %364 = vmatpush1.msra.mxu0 0.0
        %365 = vmatprep.subr.mxu0 0.0
        %366 = vmatpush1.msra.mxu0 0.0
        %367 = vmatprep.mubr.f32.mxu0 0.0
        %368 = vmatmul.mubr.f32.gmra.mrb[0].mxu0 %v298
        %v369 = vpop.f32.mrb[0].mxu0
        %v370 = vadd.f32 0.0, %v369
        %v371 = vpop.f32.mrb[0].mxu0
        %v372 = vadd.f32 0.0, %v371
        %373 = vmatprep.mubr.f32.mxu0 0.0
        %374 = vmatmul.mubr.f32.gmra.mrb[0].mxu0 %v301
        %v375 = vpop.f32.mrb[0].mxu0
        %v376 = vadd.f32 0.0, %v375
        %v377 = vpop.f32.mrb[0].mxu0
        %v378 = vadd.f32 0.0, %v377
        %379 = vdwg.mxu0
        %380 = vst [vmem:[%s208] sm:$0xff] %v370
        %381 = vst [vmem:[%s208 + $0x8] sm:$0xff] %v372
        %382 = vst [vmem:[%s208 + $0x10] sm:$0xf] %v376
        %383 = vst [vmem:[%s208 + $0x18] sm:$0xf] %v378
        %s384 = sand.u32 %s95, 1
        %s385 = scalar_lea.sflag [#allocation3], %s384
        %s386 = sand.u32 %s95, 1
        %s387 = smul.addr %s386, 16
        %s388 = scalar_lea.vmem [#allocation2], %s387
        %p389 = scmp.lt.s32.totalorder %s19, 1
        %s390 = scalar_select %p389, %s19, 1
        %s391 = smul.addr %s390, 4
        %s392 = smul.addr %s391, 8
        %s393 = scalar_lea.vmem %s4, %s392
        // Predicated region
        $region33: #{tpu_custom_call.1} parent=31 // pred_check
          %p394 = pneg %p105
        $region34: #{tpu_custom_call.1} parent=31 // pred_check_branch
          %396 = sbr.rel (%p394) target = $region36
        $region35: #{tpu_custom_call.1} parent=31 // pred_region
          %s398 = ssub.s32 256, 256
          %399 = vsyncadd %s385, %s398
          %s400 = smul.addr %s19, 2
          %s401 = smul.addr %s400, 128
          %s402 = scalar_lea.hbm %s3, %s401
          %s404 = sshll.u32 %s388, 4
          %s405 = int_to_ptr.vmem [resolvable:$true] %s404
          %407 = dma.vmem_to_hbm [thread:$0]  %s405, 256, %s402, %s385
        $region36: #{tpu_custom_call.1} parent=31 // pred_fallthru
          _
        // Predicated region
        $region37: #{tpu_custom_call.1} parent=31 // pred_check
          %p408 = pneg %p131
        $region38: #{tpu_custom_call.1} parent=31 // pred_check_branch
          %410 = sbr.rel (%p408) target = $region40
        $region39: #{tpu_custom_call.1} parent=31 // pred_region
          _
        $region40: #{tpu_custom_call.1} parent=31 // pred_fallthru
          _
      $region32: #{tpu_custom_call.1} parent=5 // pred_fallthru
        _
      %p411 = scmp.le.s32.totalorder 2, %s14
      // Predicated region
      $region41: #{tpu_custom_call.1} parent=5 // pred_check
        %p412 = pneg %p411
      $region42: #{tpu_custom_call.1} parent=5 // pred_check_branch
        %414 = sbr.rel (%p412) target = $region44
      $region43: #{tpu_custom_call.1} parent=5 // pred_region
        %s415 = ssub.s32 %s14, 2
        // Predicated region
        $region45: #{tpu_custom_call.1} parent=43 // pred_check
          %p416 = pneg %p111
        $region46: #{tpu_custom_call.1} parent=43 // pred_check_branch
          %418 = sbr.rel (%p416) target = $region48
        $region47: #{tpu_custom_call.1} parent=43 // pred_region
          %s419 = sand.u32 %s96, 1
          %s420 = scalar_lea.sflag [#allocation3], %s419
          %s421 = sand.u32 %s96, 1
          %s422 = smul.addr %s421, 16
          %s423 = scalar_lea.vmem [#allocation2], %s422
          %424 = dma.done %s420, 256
        $region48: #{tpu_custom_call.1} parent=43 // pred_fallthru
          _
        // Predicated region
        $region49: #{tpu_custom_call.1} parent=43 // pred_check
          %p425 = pneg %p137
        $region50: #{tpu_custom_call.1} parent=43 // pred_check_branch
          %427 = sbr.rel (%p425) target = $region52
        $region51: #{tpu_custom_call.1} parent=43 // pred_region
          %p428 = scmp.lt.s32.totalorder %s20, 1
          %s429 = scalar_select %p428, %s20, 1
          %s430 = smul.addr %s429, 4
          %s431 = smul.addr %s430, 8
          %s432 = scalar_lea.vmem %s4, %s431
        $region52: #{tpu_custom_call.1} parent=43 // pred_fallthru
          _
      $region44: #{tpu_custom_call.1} parent=5 // pred_fallthru
        _
    $region6: #{tpu_custom_call.1} parent=1 // loop_footer
      %s18 = sadd.s32 1, %s14
    $region7: #{tpu_custom_call.1} parent=1 // loop_footer_branch
      %13 = sbr.rel target = $region3
    $region8: #{tpu_custom_call.1} parent=1 // loop_exit
      _
    %433 = vsyncpa [#allocation3], 1
    %s434 = scalar_lea.sflag [#allocation3], 1
    %435 = vsyncpa %s434, 1

</llo_original>
